<compile_context>
chip_gen: v6e
topology: v6e:2x2x1
jax: 0.10.0
libtpu: 0.0.40
codegen_flags: <defaults>
</compile_context>

<pallas_src>
import functools

import jax
import jax.numpy as jnp
from jax.experimental import pallas as pl
from jax.experimental.pallas import tpu as pltpu


def _spconv_kernel(x_ref, w_ref, b_ref, o_ref, *, tap_offsets, l_pad):
    """One batch-block per grid step, ONE MXU matmul for the whole block.

    x_ref : (bb, Cin, Lx_pad)  flat images (zero tail pad)
    w_ref : (N, K)             K = kh*kw*Cin, rows ordered (tap, cin)
    b_ref : (N, 1)             bias column
    o_ref : (bb, N, Lpad)      Lpad multiple of 128; columns past Hp*W and the
                               full-stride columns (w >= Wp) are garbage and
                               dropped in the wrapper.
    """
    bb = x_ref.shape[0]
    # Each conv tap (ki, kj) is a constant flat shift ki*W + kj of the image.
    # Stack the kh*kw shifted views along K (sublane axis) and the images of
    # the block along the lane axis; Lpad is a multiple of 128 so every image
    # lands lane-aligned.  Each shifted view is materialized exactly once.
    cols = []
    for b in range(bb):
        img = x_ref[b]                                         # (Cin, Lx_pad)
        cols.append(jnp.concatenate(
            [img[:, off:off + l_pad] for off in tap_offsets], axis=0))
    a = jnp.concatenate(cols, axis=1) if bb > 1 else cols[0]   # (K, bb*Lpad)

    # Single (N, K) x (K, bb*Lpad) matmul, f32 accumulate, plus bias.
    res = jnp.dot(w_ref[...], a, preferred_element_type=jnp.float32)
    res = res + b_ref[...]

    for b in range(bb):
        o_ref[b] = res[:, b * l_pad:(b + 1) * l_pad].astype(o_ref.dtype)


def sp_conv_transpose2d(x_nchw, weight, bias, kernel_size, out_channels, r,
                        batch_block=None):
    """Forward pass of SPConvTranspose2d.

    x_nchw : (B, Cin, H, W)
    weight : (out_channels*r, Cin, kh, kw)   (PyTorch Conv2d layout)
    bias   : (out_channels*r,)
    Returns (B, out_channels, H', W'*r) with H'=H-kh+1, W'=W-kw+1.
    """
    kh, kw = kernel_size
    B, Cin, H, W = x_nchw.shape
    Hp, Wp = H - kh + 1, W - kw + 1
    N = out_channels * r
    K = kh * kw * Cin

    # Lane-dense per-image output length (>= Hp*W, multiple of 128).
    l_pad = pl.cdiv(Hp * W, 128) * 128
    tap_offsets = tuple(ki * W + kj for ki in range(kh) for kj in range(kw))
    max_off = max(tap_offsets)
    # Flat-input length: must cover the furthest shifted view and the image.
    lx_pad = pl.cdiv(max(max_off + l_pad, H * W), 128) * 128
    # Guard the flat-shift scheme (see correctness note in the review).
    assert l_pad >= Hp * W and lx_pad >= max_off + l_pad and lx_pad >= H * W

    if batch_block is None:
        batch_block = B       # single grid step: best for single-TC v5e/v6e
    assert B % batch_block == 0
    n_steps = B // batch_block

    # Free reshape + zero tail pad: no HBM im2col, no input duplication.
    x_flat = jnp.pad(x_nchw.reshape(B, Cin, H * W),
                     ((0, 0), (0, 0), (0, lx_pad - H * W)))
    # One (N, K) weight matrix; row order (ki, kj, cin) matches the kernel's
    # tap-major activation stack.
    w_mat = jnp.transpose(weight, (0, 2, 3, 1)).reshape(N, K)
    bias_col = bias.reshape(N, 1)
    # NOTE(perf): x_flat/w_mat could be cast to bf16 here (f32 accumulate kept
    # via preferred_element_type) for ~2x input bytes / ~3x MXU-pass savings,
    # at the cost of the 1e-4 tolerance.  Left in f32.

    kernel = functools.partial(_spconv_kernel, tap_offsets=tap_offsets,
                               l_pad=l_pad)

    itemsize = x_nchw.dtype.itemsize
    cost = pl.CostEstimate(
        flops=2 * N * K * (B * l_pad) + B * N * l_pad,
        transcendentals=0,
        bytes_accessed=(x_flat.size + w_mat.size + bias_col.size
                        + B * N * l_pad) * itemsize)

    y = pl.pallas_call(
        kernel,
        out_shape=jax.ShapeDtypeStruct((B, N, l_pad), x_nchw.dtype),
        grid_spec=pltpu.PrefetchScalarGridSpec(
            num_scalar_prefetch=0,
            grid=(n_steps,),
            in_specs=[
                pl.BlockSpec((batch_block, Cin, lx_pad), lambda i: (i, 0, 0)),
                pl.BlockSpec((N, K), lambda i: (0, 0)),
                pl.BlockSpec((N, 1), lambda i: (0, 0)),
            ],
            out_specs=pl.BlockSpec((batch_block, N, l_pad),
                                   lambda i: (i, 0, 0)),
        ),
        compiler_params=pltpu.CompilerParams(
            dimension_semantics=("parallel",),   # only matters if n_steps > 1
            vmem_limit_bytes=32 * 1024 * 1024),
        cost_estimate=cost,
    )(x_flat, w_mat, bias_col)

    # Epilogue: drop pad/garbage columns and apply the sub-pixel shuffle
    # (view/permute/view) exactly as the PyTorch module does.  XLA fuses this
    # into one small copy of the ~26 KB output.
    conv = y[:, :, :Hp * W].reshape(B, N, Hp, W)[:, :, :, :Wp]
    out = conv.reshape(B, r, out_channels, Hp, Wp)
    out = jnp.transpose(out, (0, 2, 3, 4, 1))            # (B, Cout, Hp, Wp, r)
    return out.reshape(B, out_channels, Hp, Wp * r)


def _reference(x, weight, bias, out_channels, r):
    """Pure-JAX reference replicating the PyTorch module."""
    conv = jax.lax.conv_general_dilated(
        x, weight, window_strides=(1, 1), padding='VALID',
        dimension_numbers=('NCHW', 'OIHW', 'NCHW'))
    conv = conv + bias.reshape(1, -1, 1, 1)
    B, nc, H, W = conv.shape
    out = conv.reshape(B, r, nc // r, H, W)
    out = jnp.transpose(out, (0, 2, 3, 4, 1))
    return out.reshape(B, nc // r, H, -1)


if __name__ == "__main__":
    # Module config (mirrors SPConvTranspose2d(in_channels, out_channels, kernel_size, r)).
    in_channels = 4
    out_channels = 4
    r = 2
    kernel_size = (2, 3)

    B, H, W = 2, 16, 16

    key = jax.random.PRNGKey(0)
    kx, kw_, kb = jax.random.split(key, 3)

    x = jax.random.normal(kx, (B, in_channels, H, W), dtype=jnp.float32)
    weight = 0.1 * jax.random.normal(
        kw_, (out_channels * r, in_channels) + kernel_size, dtype=jnp.float32)
    bias = 0.1 * jax.random.normal(kb, (out_channels * r,), dtype=jnp.float32)

    out = sp_conv_transpose2d(x, weight, bias, kernel_size, out_channels, r)
    out = jax.block_until_ready(out)

    ref = _reference(x, weight, bias, out_channels, r)
    Hp = H - kernel_size[0] + 1
    Wp = W - kernel_size[1] + 1
    assert out.shape == (B, out_channels, Hp, Wp * r), out.shape
    assert jnp.allclose(out, ref, atol=1e-4, rtol=1e-4), "mismatch vs reference"

    print("KERNEL_OK")
</pallas_src>

<mosaic_0001>
module attributes {stable_mosaic.version = 11 : i64} {
  func.func @_spconv_kernel(%arg0: i32, %arg1: memref<2x4x384xf32, #tpu.memory_space<vmem>>, %arg2: memref<8x24xf32, #tpu.memory_space<vmem>>, %arg3: memref<8x1xf32, #tpu.memory_space<vmem>>, %arg4: memref<2x8x256xf32, #tpu.memory_space<vmem>>) attributes {dimension_semantics = [#tpu.dimension_semantics<parallel>], iteration_bounds = array<i64: 1>, scalar_prefetch = 0 : i64, scratch_operands = 0 : i64, tpu.core_type = #tpu.core_type<tc>, window_params = [{transform_indices = @transform_0, window_bounds = array<i64: 2, 4, 384>}, {pipeline_mode = #tpu.pipeline_mode<synchronous>, transform_indices = @transform_1, window_bounds = array<i64: 8, 24>}, {pipeline_mode = #tpu.pipeline_mode<synchronous>, transform_indices = @transform_2, window_bounds = array<i64: 8, 1>}, {transform_indices = @transform_3, window_bounds = array<i64: 2, 8, 256>}]} {
    %c0 = arith.constant 0 : index
    %c0_0 = arith.constant 0 : index
    %c0_1 = arith.constant 0 : index
    %0 = vector.load %arg1[%c0, %c0_0, %c0_1] : memref<2x4x384xf32, #tpu.memory_space<vmem>>, vector<1x4x384xf32>
    %1 = vector.shape_cast %0 : vector<1x4x384xf32> to vector<4x384xf32>
    %2 = vector.extract_strided_slice %1 {offsets = [0, 0], sizes = [4, 256], strides = [1, 1]} : vector<4x384xf32> to vector<4x256xf32>
    %3 = vector.extract_strided_slice %1 {offsets = [0, 1], sizes = [4, 256], strides = [1, 1]} : vector<4x384xf32> to vector<4x256xf32>
    %4 = vector.extract_strided_slice %1 {offsets = [0, 2], sizes = [4, 256], strides = [1, 1]} : vector<4x384xf32> to vector<4x256xf32>
    %5 = vector.extract_strided_slice %1 {offsets = [0, 16], sizes = [4, 256], strides = [1, 1]} : vector<4x384xf32> to vector<4x256xf32>
    %6 = vector.extract_strided_slice %1 {offsets = [0, 17], sizes = [4, 256], strides = [1, 1]} : vector<4x384xf32> to vector<4x256xf32>
    %7 = vector.extract_strided_slice %1 {offsets = [0, 18], sizes = [4, 256], strides = [1, 1]} : vector<4x384xf32> to vector<4x256xf32>
    %8 = tpu.concatenate %2, %3, %4, %5, %6, %7 in 0 : vector<4x256xf32>, vector<4x256xf32>, vector<4x256xf32>, vector<4x256xf32>, vector<4x256xf32>, vector<4x256xf32> -> vector<24x256xf32>
    %c1 = arith.constant 1 : index
    %c0_2 = arith.constant 0 : index
    %c0_3 = arith.constant 0 : index
    %9 = vector.load %arg1[%c1, %c0_2, %c0_3] : memref<2x4x384xf32, #tpu.memory_space<vmem>>, vector<1x4x384xf32>
    %10 = vector.shape_cast %9 : vector<1x4x384xf32> to vector<4x384xf32>
    %11 = vector.extract_strided_slice %10 {offsets = [0, 0], sizes = [4, 256], strides = [1, 1]} : vector<4x384xf32> to vector<4x256xf32>
    %12 = vector.extract_strided_slice %10 {offsets = [0, 1], sizes = [4, 256], strides = [1, 1]} : vector<4x384xf32> to vector<4x256xf32>
    %13 = vector.extract_strided_slice %10 {offsets = [0, 2], sizes = [4, 256], strides = [1, 1]} : vector<4x384xf32> to vector<4x256xf32>
    %14 = vector.extract_strided_slice %10 {offsets = [0, 16], sizes = [4, 256], strides = [1, 1]} : vector<4x384xf32> to vector<4x256xf32>
    %15 = vector.extract_strided_slice %10 {offsets = [0, 17], sizes = [4, 256], strides = [1, 1]} : vector<4x384xf32> to vector<4x256xf32>
    %16 = vector.extract_strided_slice %10 {offsets = [0, 18], sizes = [4, 256], strides = [1, 1]} : vector<4x384xf32> to vector<4x256xf32>
    %17 = tpu.concatenate %11, %12, %13, %14, %15, %16 in 0 : vector<4x256xf32>, vector<4x256xf32>, vector<4x256xf32>, vector<4x256xf32>, vector<4x256xf32>, vector<4x256xf32> -> vector<24x256xf32>
    %18 = tpu.concatenate %8, %17 in 1 : vector<24x256xf32>, vector<24x256xf32> -> vector<24x512xf32>
    %c0_4 = arith.constant 0 : index
    %c0_5 = arith.constant 0 : index
    %19 = vector.load %arg2[%c0_4, %c0_5] : memref<8x24xf32, #tpu.memory_space<vmem>>, vector<8x24xf32>
    %cst = arith.constant dense<0.000000e+00> : vector<8x512xf32>
    %20 = tpu.matmul %19, %18, %cst {dimension_numbers = #tpu.dot_dimension_numbers<[1], [0], [0], [1], [0, 0, 1, 1], [], []>} : vector<8x24xf32>, vector<24x512xf32>, vector<8x512xf32> -> vector<8x512xf32>
    %c0_6 = arith.constant 0 : index
    %c0_7 = arith.constant 0 : index
    %21 = vector.load %arg3[%c0_6, %c0_7] : memref<8x1xf32, #tpu.memory_space<vmem>>, vector<8x1xf32>
    %22 = vector.broadcast %21 : vector<8x1xf32> to vector<8x512xf32>
    %23 = arith.addf %20, %22 : vector<8x512xf32>
    %24 = vector.extract_strided_slice %23 {offsets = [0, 0], sizes = [8, 256], strides = [1, 1]} : vector<8x512xf32> to vector<8x256xf32>
    %c0_8 = arith.constant 0 : index
    %c0_9 = arith.constant 0 : index
    %c0_10 = arith.constant 0 : index
    %25 = vector.load %arg4[%c0_8, %c0_9, %c0_10] : memref<2x8x256xf32, #tpu.memory_space<vmem>>, vector<1x8x256xf32>
    %26 = vector.shape_cast %25 : vector<1x8x256xf32> to vector<8x256xf32>
    %27 = vector.shape_cast %24 : vector<8x256xf32> to vector<1x8x256xf32>
    tpu.vector_store %arg4[%c0_8, %c0_9, %c0_10], %27 {strides = array<i32>} : memref<2x8x256xf32, #tpu.memory_space<vmem>>, vector<1x8x256xf32>,
    %28 = vector.extract_strided_slice %23 {offsets = [0, 256], sizes = [8, 256], strides = [1, 1]} : vector<8x512xf32> to vector<8x256xf32>
    %c1_11 = arith.constant 1 : index
    %c0_12 = arith.constant 0 : index
    %c0_13 = arith.constant 0 : index
    %29 = vector.load %arg4[%c1_11, %c0_12, %c0_13] : memref<2x8x256xf32, #tpu.memory_space<vmem>>, vector<1x8x256xf32>
    %30 = vector.shape_cast %29 : vector<1x8x256xf32> to vector<8x256xf32>
    %31 = vector.shape_cast %28 : vector<8x256xf32> to vector<1x8x256xf32>
    tpu.vector_store %arg4[%c1_11, %c0_12, %c0_13], %31 {strides = array<i32>} : memref<2x8x256xf32, #tpu.memory_space<vmem>>, vector<1x8x256xf32>,
    return
  }
  func.func @transform_0(%arg0: i32) -> (i32, i32, i32) {
    %c0_i32 = arith.constant 0 : i32
    %c0_i32_0 = arith.constant 0 : i32
    %c0_i32_1 = arith.constant 0 : i32
    return %arg0, %c0_i32, %c0_i32_0 : i32, i32, i32
  }
  func.func @transform_1(%arg0: i32) -> (i32, i32) {
    %c0_i32 = arith.constant 0 : i32
    %c0_i32_0 = arith.constant 0 : i32
    %c0_i32_1 = arith.constant 0 : i32
    return %c0_i32, %c0_i32_0 : i32, i32
  }
  func.func @transform_2(%arg0: i32) -> (i32, i32) {
    %c0_i32 = arith.constant 0 : i32
    %c0_i32_0 = arith.constant 0 : i32
    %c0_i32_1 = arith.constant 0 : i32
    return %c0_i32, %c0_i32_0 : i32, i32
  }
  func.func @transform_3(%arg0: i32) -> (i32, i32, i32) {
    %c0_i32 = arith.constant 0 : i32
    %c0_i32_0 = arith.constant 0 : i32
    %c0_i32_1 = arith.constant 0 : i32
    return %arg0, %c0_i32, %c0_i32_0 : i32, i32, i32
  }
}

</mosaic_0001>

<llo_original>
// kernel: tpu_custom_call.1
$region0: #{tpu_custom_call.1}
  #allocation0 [shape = 'u32[]', space=smem, size = 0x4, offset = 0x4, fixed_abs, tag = 'smem constant byte address 0x4 - core index']
  #allocation1 [shape = 'u32[144,128]{1,0:T(1,128)}', space=vmem, size = 0x12000, scoped, tag = 'internal scratch']
  %s0 = inlined_call_operand.hbm [shape: f32[2,4,384], index: 0, kind: input, shape index: {}]
  %s1 = inlined_call_operand.vmem [shape: f32[8,24], index: 1, kind: input, shape index: {}]
  %s2 = inlined_call_operand.vmem [shape: f32[8,1], index: 2, kind: input, shape index: {}]
  %s3 = inlined_call_operand.hbm [shape: f32[2,8,256], index: 3, kind: output, shape index: {}]
  %s4 = sld [smem:[#allocation0]]
  $region26: #{tpu_custom_call.1} parent=0
    _
  %s6 = ssub.s32 1, %s4
  %s7 = scalar_select 0, %s6, %s4
  $region1: #{tpu_custom_call.1} parent=0
    #allocation2 [shape = 'u8[12288]{0}', space=vmem, size = 0x3000, scoped, tag = 'input window, operand 0, single buffered']
    #allocation3 [shape = 's32[1]{0}', space=sflag, size = 0x4, scoped, tag = 'scoped memory for tpu_custom_call.1']
    #allocation4 [shape = 's32[1]{0}', space=sflag, size = 0x4, scoped, tag = 'scoped memory for tpu_custom_call.1']
    #allocation5 [shape = 'u8[16384]{0}', space=vmem, size = 0x4000, scoped, tag = 'output window, operand 0, single buffered']
    %8 = vsyncpa [#allocation3], 0
    %9 = vsyncpa [#allocation4], 0
    // Predicated region
    $region2: #{tpu_custom_call.1} parent=1 // pred_check
      _
    $region3: #{tpu_custom_call.1} parent=1 // pred_check_branch
      %11 = sbr.rel (0) target = $region5
    $region4: #{tpu_custom_call.1} parent=1 // pred_region
      %s13 = ssub.s32 384, 384
      %14 = vsyncadd [#allocation3], %s13
      %s15 = sshll.u32 [#allocation2], 4
      %s16 = int_to_ptr.vmem [resolvable:$true] %s15
      %21 = dma.hbm_to_vmem [thread:$0]  %s0, 384, %s16, [#allocation3], 192, 192, 12
    $region5: #{tpu_custom_call.1} parent=1 // pred_fallthru
      _
    // Predicated region
    $region6: #{tpu_custom_call.1} parent=1 // pred_check
      _
    $region7: #{tpu_custom_call.1} parent=1 // pred_check_branch
      %23 = sbr.rel (0) target = $region9
    $region8: #{tpu_custom_call.1} parent=1 // pred_region
      _
    $region9: #{tpu_custom_call.1} parent=1 // pred_fallthru
      _
    // Predicated region
    $region10: #{tpu_custom_call.1} parent=1 // pred_check
      _
    $region11: #{tpu_custom_call.1} parent=1 // pred_check_branch
      %25 = sbr.rel (0) target = $region13
    $region12: #{tpu_custom_call.1} parent=1 // pred_region
      _
    $region13: #{tpu_custom_call.1} parent=1 // pred_fallthru
      _
    // Predicated region
    $region14: #{tpu_custom_call.1} parent=1 // pred_check
      _
    $region15: #{tpu_custom_call.1} parent=1 // pred_check_branch
      %27 = sbr.rel (0) target = $region17
    $region16: #{tpu_custom_call.1} parent=1 // pred_region
      %28 = dma.done [#allocation3], 384
    $region17: #{tpu_custom_call.1} parent=1 // pred_fallthru
      _
    %v29 = vld [vmem:[#allocation2] sm:$0xff]
    %v30 = vld [vmem:[#allocation2 + $0x8] sm:$0xf]
    %v32 = vcombine.high %v29, %v29
    %v35 = vcombine.low %v29, %v29
    %v36 = vcombine.low %v30, %v30
    %37 = vrot.lane.b32.xlu0 %v35, 127
    %v38 = vpop.permute.xlu0 %37
    %39 = vrot.lane.b32.xlu0 %v29, 127
    %v40 = vpop.permute.xlu0 %39
    %41 = vrot.lane.b32.xlu0 %v36, 127
    %v42 = vpop.permute.xlu0 %41
    %vm43 = vcmask 1039360
    %v44 = vsel %vm43, %v38, %v40
    %v45 = vsel %vm43, %v40, %v42
    %48 = vrot.lane.b32.xlu0 %v29, 126
    %v49 = vpop.permute.xlu0 %48
    %50 = vrot.lane.b32.xlu0 %v32, 126
    %v51 = vpop.permute.xlu0 %50
    %52 = vrot.lane.b32.xlu0 %v30, 126
    %v53 = vpop.permute.xlu0 %52
    %vm54 = vcmask 1031168
    %v55 = vsel %vm54, %v49, %v51
    %v56 = vsel %vm54, %v51, %v53
    %59 = vrot.lane.b32.xlu0 %v35, 112
    %v60 = vpop.permute.xlu0 %59
    %61 = vrot.lane.b32.xlu0 %v29, 112
    %v62 = vpop.permute.xlu0 %61
    %63 = vrot.lane.b32.xlu0 %v36, 112
    %v64 = vpop.permute.xlu0 %63
    %vm65 = vcmask 916480
    %v66 = vsel %vm65, %v60, %v62
    %v67 = vsel %vm65, %v62, %v64
    %70 = vrot.lane.b32.xlu0 %v29, 111
    %v71 = vpop.permute.xlu0 %70
    %72 = vrot.lane.b32.xlu0 %v32, 111
    %v73 = vpop.permute.xlu0 %72
    %74 = vrot.lane.b32.xlu0 %v30, 111
    %v75 = vpop.permute.xlu0 %74
    %vm76 = vcmask 908288
    %v77 = vsel %vm76, %v71, %v73
    %v78 = vsel %vm76, %v73, %v75
    %81 = vrot.lane.b32.xlu0 %v35, 110
    %v82 = vpop.permute.xlu0 %81
    %83 = vrot.lane.b32.xlu0 %v29, 110
    %v84 = vpop.permute.xlu0 %83
    %85 = vrot.lane.b32.xlu0 %v36, 110
    %v86 = vpop.permute.xlu0 %85
    %vm87 = vcmask 900096
    %v88 = vsel %vm87, %v82, %v84
    %v89 = vsel %vm87, %v84, %v86
    %vm92 = vcmask 1043456
    %v93 = vsel %vm92, %v29, %v44
    %v94 = vsel %vm92, %v32, %v45
    %v95 = vsel %vm92, %v55, %v66
    %v96 = vsel %vm92, %v56, %v67
    %v97 = vsel %vm92, %v77, %v88
    %v98 = vsel %vm92, %v78, %v89
    %s99 = scalar_lea.vmem [#allocation2], 12
    %v100 = vld [vmem:[%s99] sm:$0xff]
    %v101 = vld [vmem:[%s99 + $0x8] sm:$0xf]
    %v103 = vcombine.high %v100, %v100
    %v106 = vcombine.low %v100, %v100
    %v107 = vcombine.low %v101, %v101
    %108 = vrot.lane.b32.xlu0 %v106, 127
    %v109 = vpop.permute.xlu0 %108
    %110 = vrot.lane.b32.xlu0 %v100, 127
    %v111 = vpop.permute.xlu0 %110
    %112 = vrot.lane.b32.xlu0 %v107, 127
    %v113 = vpop.permute.xlu0 %112
    %v114 = vsel %vm43, %v109, %v111
    %v115 = vsel %vm43, %v111, %v113
    %118 = vrot.lane.b32.xlu0 %v100, 126
    %v119 = vpop.permute.xlu0 %118
    %120 = vrot.lane.b32.xlu0 %v103, 126
    %v121 = vpop.permute.xlu0 %120
    %122 = vrot.lane.b32.xlu0 %v101, 126
    %v123 = vpop.permute.xlu0 %122
    %v124 = vsel %vm54, %v119, %v121
    %v125 = vsel %vm54, %v121, %v123
    %128 = vrot.lane.b32.xlu0 %v106, 112
    %v129 = vpop.permute.xlu0 %128
    %130 = vrot.lane.b32.xlu0 %v100, 112
    %v131 = vpop.permute.xlu0 %130
    %132 = vrot.lane.b32.xlu0 %v107, 112
    %v133 = vpop.permute.xlu0 %132
    %v134 = vsel %vm65, %v129, %v131
    %v135 = vsel %vm65, %v131, %v133
    %138 = vrot.lane.b32.xlu0 %v100, 111
    %v139 = vpop.permute.xlu0 %138
    %140 = vrot.lane.b32.xlu0 %v103, 111
    %v141 = vpop.permute.xlu0 %140
    %142 = vrot.lane.b32.xlu0 %v101, 111
    %v143 = vpop.permute.xlu0 %142
    %v144 = vsel %vm76, %v139, %v141
    %v145 = vsel %vm76, %v141, %v143
    %148 = vrot.lane.b32.xlu0 %v106, 110
    %v149 = vpop.permute.xlu0 %148
    %150 = vrot.lane.b32.xlu0 %v100, 110
    %v151 = vpop.permute.xlu0 %150
    %152 = vrot.lane.b32.xlu0 %v107, 110
    %v153 = vpop.permute.xlu0 %152
    %v154 = vsel %vm87, %v149, %v151
    %v155 = vsel %vm87, %v151, %v153
    %v158 = vsel %vm92, %v100, %v114
    %v159 = vsel %vm92, %v103, %v115
    %v160 = vsel %vm92, %v124, %v134
    %v161 = vsel %vm92, %v125, %v135
    %v162 = vsel %vm92, %v144, %v154
    %v163 = vsel %vm92, %v145, %v155
    %v164 = vld [vmem:[%s1] sm:$0xff]
    %v165 = vld [vmem:[%s2] sm:$0xff]
    %167 = vset.pattern.permute.xlu0 0
    %168 = vperm.xlu0 %167, %v165
    %v169 = vpop.permute.xlu0 %168
    %vm171 = vcmask 195584
    %v173 = vsel %vm171, %v164, 0
    %175 = vmatprep.subr.mxu0 0.0
    %176 = vmatpush1.msra.mxu0 0.0
    %177 = vmatprep.subr.mxu0 0.0
    %178 = vmatpush1.msra.mxu0 0.0
    %179 = vmatprep.subr.mxu0 0.0
    %180 = vmatpush1.msra.mxu0 0.0
    %181 = vmatprep.subr.mxu0 0.0
    %182 = vmatpush1.msra.mxu0 0.0
    %183 = vmatprep.subr.mxu0 0.0
    %184 = vmatpush1.msra.mxu0 0.0
    %185 = vmatprep.subr.mxu0 0.0
    %186 = vmatpush1.msra.mxu0 0.0
    %187 = vmatprep.subr.mxu0 0.0
    %188 = vmatpush1.msra.mxu0 0.0
    %189 = vmatprep.subr.mxu0 0.0
    %190 = vmatpush1.msra.mxu0 0.0
    %191 = vmatprep.subr.mxu0 0.0
    %192 = vmatpush1.msra.mxu0 0.0
    %193 = vmatprep.subr.mxu0 0.0
    %194 = vmatpush1.msra.mxu0 0.0
    %195 = vmatprep.subr.mxu0 0.0
    %196 = vmatpush1.msra.mxu0 0.0
    %197 = vmatprep.subr.mxu0 0.0
    %198 = vmatpush1.msra.mxu0 0.0
    %199 = vmatprep.subr.mxu0 0.0
    %200 = vmatpush1.msra.mxu0 0.0
    %201 = vmatprep.subr.mxu0 %v98
    %202 = vmatpush1.msra.mxu0 %v97
    %203 = vmatprep.subr.mxu0 %v96
    %204 = vmatpush1.msra.mxu0 %v95
    %205 = vmatprep.subr.mxu0 %v94
    %206 = vmatpush1.msra.mxu0 %v93
    %207 = vmatprep.subr.mxu0 0.0
    %208 = vmatpush2.msra.mxu0 0.0
    %209 = vmatprep.subr.mxu0 0.0
    %210 = vmatpush2.msra.mxu0 0.0
    %211 = vmatprep.subr.mxu0 0.0
    %212 = vmatpush2.msra.mxu0 0.0
    %213 = vmatprep.subr.mxu0 0.0
    %214 = vmatpush2.msra.mxu0 0.0
    %215 = vmatprep.subr.mxu0 0.0
    %216 = vmatpush2.msra.mxu0 0.0
    %217 = vmatprep.subr.mxu0 0.0
    %218 = vmatpush2.msra.mxu0 0.0
    %219 = vmatprep.subr.mxu0 0.0
    %220 = vmatpush2.msra.mxu0 0.0
    %221 = vmatprep.subr.mxu0 0.0
    %222 = vmatpush2.msra.mxu0 0.0
    %223 = vmatprep.subr.mxu0 0.0
    %224 = vmatpush2.msra.mxu0 0.0
    %225 = vmatprep.subr.mxu0 0.0
    %226 = vmatpush2.msra.mxu0 0.0
    %227 = vmatprep.subr.mxu0 0.0
    %228 = vmatpush2.msra.mxu0 0.0
    %229 = vmatprep.subr.mxu0 0.0
    %230 = vmatpush2.msra.mxu0 0.0
    %231 = vmatprep.subr.mxu0 0.0
    %232 = vmatpush2.msra.mxu0 0.0
    %233 = vmatprep.subr.mxu0 0.0
    %234 = vmatpush2.msra.mxu0 0.0
    %235 = vmatprep.subr.mxu0 0.0
    %236 = vmatpush2.msra.mxu0 0.0
    %237 = vmatprep.subr.mxu0 0.0
    %238 = vmatpush2.msra.mxu0 0.0
    %239 = vmatprep.mubr.f32.mxu0 0.0
    %240 = vmatmul.mubr.f32.gmra.mxu0 %v173
    %v241 = vpop.f32.mrf.mxu0
    %v242 = vadd.f32 %v169, %v241
    %v243 = vpop.f32.mrf.mxu0
    %v244 = vadd.f32 %v169, %v243
    %245 = vdwg.mxu0
    %246 = vmatprep.subr.mxu0 0.0
    %247 = vmatpush1.msra.mxu0 0.0
    %248 = vmatprep.subr.mxu0 0.0
    %249 = vmatpush1.msra.mxu0 0.0
    %250 = vmatprep.subr.mxu0 0.0
    %251 = vmatpush1.msra.mxu0 0.0
    %252 = vmatprep.subr.mxu0 0.0
    %253 = vmatpush1.msra.mxu0 0.0
    %254 = vmatprep.subr.mxu0 0.0
    %255 = vmatpush1.msra.mxu0 0.0
    %256 = vmatprep.subr.mxu0 0.0
    %257 = vmatpush1.msra.mxu0 0.0
    %258 = vmatprep.subr.mxu0 0.0
    %259 = vmatpush1.msra.mxu0 0.0
    %260 = vmatprep.subr.mxu0 0.0
    %261 = vmatpush1.msra.mxu0 0.0
    %262 = vmatprep.subr.mxu0 0.0
    %263 = vmatpush1.msra.mxu0 0.0
    %264 = vmatprep.subr.mxu0 0.0
    %265 = vmatpush1.msra.mxu0 0.0
    %266 = vmatprep.subr.mxu0 0.0
    %267 = vmatpush1.msra.mxu0 0.0
    %268 = vmatprep.subr.mxu0 0.0
    %269 = vmatpush1.msra.mxu0 0.0
    %270 = vmatprep.subr.mxu0 0.0
    %271 = vmatpush1.msra.mxu0 0.0
    %272 = vmatprep.subr.mxu0 %v163
    %273 = vmatpush1.msra.mxu0 %v162
    %274 = vmatprep.subr.mxu0 %v161
    %275 = vmatpush1.msra.mxu0 %v160
    %276 = vmatprep.subr.mxu0 %v159
    %277 = vmatpush1.msra.mxu0 %v158
    %278 = vmatprep.subr.mxu0 0.0
    %279 = vmatpush2.msra.mxu0 0.0
    %280 = vmatprep.subr.mxu0 0.0
    %281 = vmatpush2.msra.mxu0 0.0
    %282 = vmatprep.subr.mxu0 0.0
    %283 = vmatpush2.msra.mxu0 0.0
    %284 = vmatprep.subr.mxu0 0.0
    %285 = vmatpush2.msra.mxu0 0.0
    %286 = vmatprep.subr.mxu0 0.0
    %287 = vmatpush2.msra.mxu0 0.0
    %288 = vmatprep.subr.mxu0 0.0
    %289 = vmatpush2.msra.mxu0 0.0
    %290 = vmatprep.subr.mxu0 0.0
    %291 = vmatpush2.msra.mxu0 0.0
    %292 = vmatprep.subr.mxu0 0.0
    %293 = vmatpush2.msra.mxu0 0.0
    %294 = vmatprep.subr.mxu0 0.0
    %295 = vmatpush2.msra.mxu0 0.0
    %296 = vmatprep.subr.mxu0 0.0
    %297 = vmatpush2.msra.mxu0 0.0
    %298 = vmatprep.subr.mxu0 0.0
    %299 = vmatpush2.msra.mxu0 0.0
    %300 = vmatprep.subr.mxu0 0.0
    %301 = vmatpush2.msra.mxu0 0.0
    %302 = vmatprep.subr.mxu0 0.0
    %303 = vmatpush2.msra.mxu0 0.0
    %304 = vmatprep.subr.mxu0 0.0
    %305 = vmatpush2.msra.mxu0 0.0
    %306 = vmatprep.subr.mxu0 0.0
    %307 = vmatpush2.msra.mxu0 0.0
    %308 = vmatprep.subr.mxu0 0.0
    %309 = vmatpush2.msra.mxu0 0.0
    %310 = vmatprep.mubr.f32.mxu0 0.0
    %311 = vmatmul.mubr.f32.gmra.mxu0 %v173
    %v312 = vpop.f32.mrf.mxu0
    %v313 = vadd.f32 %v169, %v312
    %v314 = vpop.f32.mrf.mxu0
    %v315 = vadd.f32 %v169, %v314
    %316 = vdwg.mxu0
    %317 = vst [vmem:[#allocation5] sm:$0xff] %v242
    %318 = vst [vmem:[#allocation5 + $0x8] sm:$0xff] %v244
    %s319 = scalar_lea.vmem [#allocation5], 16
    %320 = vst [vmem:[%s319] sm:$0xff] %v313
    %321 = vst [vmem:[%s319 + $0x8] sm:$0xff] %v315
    // Predicated region
    $region18: #{tpu_custom_call.1} parent=1 // pred_check
      _
    $region19: #{tpu_custom_call.1} parent=1 // pred_check_branch
      %323 = sbr.rel (0) target = $region21
    $region20: #{tpu_custom_call.1} parent=1 // pred_region
      %s325 = ssub.s32 512, 512
      %326 = vsyncadd [#allocation4], %s325
      %s327 = sshll.u32 [#allocation5], 4
      %s328 = int_to_ptr.vmem [resolvable:$true] %s327
      %333 = dma.vmem_to_hbm [thread:$0]  %s328, 512, %s3, [#allocation4], 256, 256, 16
    $region21: #{tpu_custom_call.1} parent=1 // pred_fallthru
      _
    // Predicated region
    $region22: #{tpu_custom_call.1} parent=1 // pred_check
      _
    $region23: #{tpu_custom_call.1} parent=1 // pred_check_branch
      %335 = sbr.rel (0) target = $region25
    $region24: #{tpu_custom_call.1} parent=1 // pred_region
      %336 = dma.done [#allocation4], 512
    $region25: #{tpu_custom_call.1} parent=1 // pred_fallthru
      _
    %337 = vsyncpa [#allocation3], 1
    %338 = vsyncpa [#allocation4], 1

</llo_original>
